<compile_context>
chip_gen: v7x
topology: tpu7x:2x2x1
jax: 0.10.0
libtpu: 0.0.40
codegen_flags: <defaults>
</compile_context>

<pallas_src>
import jax
import jax.numpy as jnp
from jax.experimental import pallas as pl
from jax.experimental.pallas import tpu as pltpu


def _round_up(x, m):
    return (x + m - 1) // m * m


def _pick_tile(n, unit, target):
    """Pick a tile for one dim. Returns (tile, padded_extent).

    Prefers the largest multiple of `unit` <= `target` that divides `n`
    exactly (no padding copy). For small ragged dims uses a full-extent block
    (always layout-legal); otherwise pads up to a multiple of `target`.
    """
    if n % unit == 0:
        best = unit
        t = unit
        lim = min(n, target)
        while t <= lim:
            if n % t == 0:
                best = t
            t += unit
        return best, n
    if n <= target:
        return n, n                      # full-extent block, no padding needed
    return target, _round_up(n, target)  # pad; target is a multiple of `unit`


def _make_abs_mean_kernel(inv_n):
    """Accumulate sum(|x|) over spatial tiles; scale by 1/(H*W) on last step."""
    def kernel(x_ref, o_ref):
        @pl.when(pl.program_id(1) == 0)
        def _():
            o_ref[...] = jnp.zeros_like(o_ref)

        o_ref[...] += jnp.sum(jnp.abs(x_ref[...]), axis=-1, keepdims=True)

        @pl.when(pl.program_id(1) == pl.num_programs(1) - 1)
        def _():
            o_ref[...] = o_ref[...] * inv_n

    return kernel


def _apply_kernel(x_ref, t_ref, o_ref):
    """out = x - clip(x, -t, t)  ==  sign(x) * max(|x| - t, 0)   (t >= 0)."""
    x = x_ref[...]
    t = t_ref[...]                      # (TR, 1) broadcasts over the lane dim
    o_ref[...] = x - jnp.clip(x, -t, t)


def channel_threshold_forward(features, w1, b1, gamma, beta, w2, b2):
    """features: (B, C, H, W) float32. Returns same shape."""
    B, C, H, W = features.shape
    R, S = B * C, H * W

    TR, R_pad = _pick_tile(R, 8, 128)      # rows: sublane unit 8
    TS, S_pad = _pick_tile(S, 128, 2048)   # lanes: unit 128, ~1 MiB blocks

    x2 = features.reshape(R, S)
    if (R_pad, S_pad) != (R, S):
        # Zero padding keeps sum(|x|) exact; padded output rows/cols are sliced off.
        x2 = jnp.pad(x2, ((0, R_pad - R), (0, S_pad - S)))

    grid = (R_pad // TR, S_pad // TS)

    # ---- Pass 1: streaming per-(B,C) mean of |x| over the spatial axis ----
    abs_mean2 = pl.pallas_call(
        _make_abs_mean_kernel(1.0 / S),
        out_shape=jax.ShapeDtypeStruct((R_pad, 1), jnp.float32),
        grid=grid,
        in_specs=[pl.BlockSpec((TR, TS), lambda i, j: (i, j))],
        out_specs=pl.BlockSpec((TR, 1), lambda i, j: (i, 0)),   # resident accumulator
        compiler_params=pltpu.CompilerParams(
            dimension_semantics=("parallel", "arbitrary")),
    )(x2)

    abs_mean = abs_mean2[:R, 0].reshape(B, C)                   # (B, C)

    # ---- Tiny C x C MLP in plain JAX (C << 128: keep it off the MXU/kernel) ----
    # BatchNorm1d in training mode (batch stats, biased variance, eps=1e-5).
    # TODO(synk): running_mean/running_var buffer updates (training side effect)
    # are not reproduced.
    s = abs_mean @ w1.T + b1
    mu = jnp.mean(s, axis=0, keepdims=True)
    var = jnp.mean((s - mu) ** 2, axis=0, keepdims=True)
    s = (s - mu) * jax.lax.rsqrt(var + 1e-5) * gamma + beta
    s = jnp.maximum(s, 0.0)
    s = jax.nn.sigmoid(s @ w2.T + b2)

    thres = (abs_mean * s).reshape(R, 1)                        # >= 0
    if R_pad != R:
        thres = jnp.pad(thres, ((0, R_pad - R), (0, 0)))

    # ---- Pass 2: streaming elementwise soft-threshold, lane-dense output ----
    out2 = pl.pallas_call(
        _apply_kernel,
        out_shape=jax.ShapeDtypeStruct((R_pad, S_pad), jnp.float32),
        grid=grid,
        in_specs=[pl.BlockSpec((TR, TS), lambda i, j: (i, j)),
                  pl.BlockSpec((TR, 1), lambda i, j: (i, 0))],
        out_specs=pl.BlockSpec((TR, TS), lambda i, j: (i, j)),
        compiler_params=pltpu.CompilerParams(
            dimension_semantics=("parallel", "parallel")),
    )(x2, thres)

    if (R_pad, S_pad) != (R, S):
        out2 = out2[:R, :S]
    return out2.reshape(B, C, H, W)


def reference_forward(features, w1, b1, gamma, beta, w2, b2):
    """Pure-JAX reference mirroring the PyTorch forward (training-mode BN)."""
    x_abs = jnp.abs(features)
    abs_mean = jnp.mean(x_abs, axis=(2, 3))                 # (B, C)
    s = abs_mean @ w1.T + b1
    mu = jnp.mean(s, axis=0, keepdims=True)
    var = jnp.mean((s - mu) ** 2, axis=0, keepdims=True)
    s = (s - mu) / jnp.sqrt(var + 1e-5) * gamma + beta
    s = jnp.maximum(s, 0.0)
    s = s @ w2.T + b2
    s = jax.nn.sigmoid(s)
    thres = (abs_mean * s)[:, :, None, None]
    n_sub = jnp.maximum(x_abs - thres, 0.0)
    return jnp.sign(features) * n_sub


if __name__ == "__main__":
    B, C, H, W = 2, 4, 16, 16

    key = jax.random.PRNGKey(0)
    kx, kw1, kb1, kw2, kb2 = jax.random.split(key, 5)

    features = jax.random.normal(kx, (B, C, H, W), dtype=jnp.float32)

    # Deterministic parameter init (PyTorch Linear-like uniform ranges).
    bound = 1.0 / jnp.sqrt(C)
    w1 = jax.random.uniform(kw1, (C, C), jnp.float32, -bound, bound)
    b1 = jax.random.uniform(kb1, (C,), jnp.float32, -bound, bound)
    w2 = jax.random.uniform(kw2, (C, C), jnp.float32, -bound, bound)
    b2 = jax.random.uniform(kb2, (C,), jnp.float32, -bound, bound)
    gamma = jnp.ones((C,), jnp.float32)     # BatchNorm1d weight init
    beta = jnp.zeros((C,), jnp.float32)     # BatchNorm1d bias init

    fwd = jax.jit(channel_threshold_forward)
    out = fwd(features, w1, b1, gamma, beta, w2, b2)
    out = jax.block_until_ready(out)

    ref = reference_forward(features, w1, b1, gamma, beta, w2, b2)
    assert out.shape == (B, C, H, W)
    assert jnp.allclose(out, ref, atol=1e-5, rtol=1e-4), "mismatch vs reference"

    print("KERNEL_OK")
</pallas_src>

<mosaic_0001>
module attributes {stable_mosaic.version = 11 : i64} {
  func.func @kernel(%arg0: i32, %arg1: i32, %arg2: memref<8x256xf32, #tpu.memory_space<vmem>>, %arg3: memref<8x1xf32, #tpu.memory_space<vmem>>) attributes {dimension_semantics = [#tpu.dimension_semantics<parallel>, #tpu.dimension_semantics<arbitrary>], iteration_bounds = array<i64: 1, 1>, scalar_prefetch = 0 : i64, scratch_operands = 0 : i64, tpu.core_type = #tpu.core_type<tc>, window_params = [{transform_indices = @transform_0, window_bounds = array<i64: 8, 256>}, {transform_indices = @transform_1, window_bounds = array<i64: 8, 1>}]} {
    %c0_i32 = arith.constant 0 : i32
    %0 = arith.cmpi eq, %arg1, %c0_i32 : i32
    %1 = arith.extui %0 : i1 to i32
    %c0_i32_0 = arith.constant 0 : i32
    %2 = arith.cmpi ne, %1, %c0_i32_0 : i32
    scf.if %2 {
      %cst_8 = arith.constant 0.000000e+00 : f32
      %13 = vector.broadcast %cst_8 : f32 to vector<8x1xf32>
      %c0_9 = arith.constant 0 : index
      %c0_10 = arith.constant 0 : index
      %14 = vector.load %arg3[%c0_9, %c0_10] : memref<8x1xf32, #tpu.memory_space<vmem>>, vector<8x1xf32>
      tpu.vector_store %arg3[%c0_9, %c0_10], %13 {strides = array<i32>} : memref<8x1xf32, #tpu.memory_space<vmem>>, vector<8x1xf32>,
    } else {
    }
    %c0 = arith.constant 0 : index
    %c0_1 = arith.constant 0 : index
    %3 = vector.load %arg3[%c0, %c0_1] : memref<8x1xf32, #tpu.memory_space<vmem>>, vector<8x1xf32>
    %c0_2 = arith.constant 0 : index
    %c0_3 = arith.constant 0 : index
    %4 = vector.load %arg2[%c0_2, %c0_3] : memref<8x256xf32, #tpu.memory_space<vmem>>, vector<8x256xf32>
    %5 = math.absf %4 : vector<8x256xf32>
    %cst = arith.constant dense<0.000000e+00> : vector<8xf32>
    %6 = vector.multi_reduction <add>, %5, %cst [1] : vector<8x256xf32> to vector<8xf32>
    %7 = vector.shape_cast %6 : vector<8xf32> to vector<8x1xf32>
    %8 = arith.addf %3, %7 : vector<8x1xf32>
    %c0_4 = arith.constant 0 : index
    %c0_5 = arith.constant 0 : index
    %9 = vector.load %arg3[%c0_4, %c0_5] : memref<8x1xf32, #tpu.memory_space<vmem>>, vector<8x1xf32>
    tpu.vector_store %arg3[%c0_4, %c0_5], %8 {strides = array<i32>} : memref<8x1xf32, #tpu.memory_space<vmem>>, vector<8x1xf32>,
    %c0_i32_6 = arith.constant 0 : i32
    %10 = arith.cmpi eq, %arg1, %c0_i32_6 : i32
    %11 = arith.extui %10 : i1 to i32
    %c0_i32_7 = arith.constant 0 : i32
    %12 = arith.cmpi ne, %11, %c0_i32_7 : i32
    scf.if %12 {
      %c0_8 = arith.constant 0 : index
      %c0_9 = arith.constant 0 : index
      %13 = vector.load %arg3[%c0_8, %c0_9] : memref<8x1xf32, #tpu.memory_space<vmem>>, vector<8x1xf32>
      %cst_10 = arith.constant 3.906250e-03 : f32
      %14 = vector.broadcast %cst_10 : f32 to vector<8x1xf32>
      %15 = arith.mulf %13, %14 : vector<8x1xf32>
      %c0_11 = arith.constant 0 : index
      %c0_12 = arith.constant 0 : index
      %16 = vector.load %arg3[%c0_11, %c0_12] : memref<8x1xf32, #tpu.memory_space<vmem>>, vector<8x1xf32>
      tpu.vector_store %arg3[%c0_11, %c0_12], %15 {strides = array<i32>} : memref<8x1xf32, #tpu.memory_space<vmem>>, vector<8x1xf32>,
    } else {
    }
    return
  }
  func.func @transform_0(%arg0: i32, %arg1: i32) -> (i32, i32) {
    %c0_i32 = arith.constant 0 : i32
    return %arg0, %arg1 : i32, i32
  }
  func.func @transform_1(%arg0: i32, %arg1: i32) -> (i32, i32) {
    %c0_i32 = arith.constant 0 : i32
    %c0_i32_0 = arith.constant 0 : i32
    return %arg0, %c0_i32 : i32, i32
  }
}

module attributes {stable_mosaic.version = 11 : i64} {
  func.func @_apply_kernel(%arg0: i32, %arg1: i32, %arg2: memref<8x256xf32, #tpu.memory_space<vmem>>, %arg3: memref<8x1xf32, #tpu.memory_space<vmem>>, %arg4: memref<8x256xf32, #tpu.memory_space<vmem>>) attributes {dimension_semantics = [#tpu.dimension_semantics<parallel>, #tpu.dimension_semantics<parallel>], iteration_bounds = array<i64: 1, 1>, scalar_prefetch = 0 : i64, scratch_operands = 0 : i64, tpu.core_type = #tpu.core_type<tc>, window_params = [{transform_indices = @transform_0, window_bounds = array<i64: 8, 256>}, {transform_indices = @transform_1, window_bounds = array<i64: 8, 1>}, {transform_indices = @transform_2, window_bounds = array<i64: 8, 256>}]} {
    %c0 = arith.constant 0 : index
    %c0_0 = arith.constant 0 : index
    %0 = vector.load %arg2[%c0, %c0_0] : memref<8x256xf32, #tpu.memory_space<vmem>>, vector<8x256xf32>
    %c0_1 = arith.constant 0 : index
    %c0_2 = arith.constant 0 : index
    %1 = vector.load %arg3[%c0_1, %c0_2] : memref<8x1xf32, #tpu.memory_space<vmem>>, vector<8x1xf32>
    %cst = arith.constant 0.000000e+00 : f32
    %2 = vector.broadcast %cst : f32 to vector<8x1xf32>
    %3 = arith.subf %2, %1 : vector<8x1xf32>
    %4 = vector.broadcast %3 : vector<8x1xf32> to vector<8x256xf32>
    %5 = arith.maximumf %4, %0 : vector<8x256xf32>
    %6 = vector.broadcast %1 : vector<8x1xf32> to vector<8x256xf32>
    %7 = arith.minimumf %6, %5 : vector<8x256xf32>
    %8 = arith.subf %0, %7 : vector<8x256xf32>
    %c0_3 = arith.constant 0 : index
    %c0_4 = arith.constant 0 : index
    %9 = vector.load %arg4[%c0_3, %c0_4] : memref<8x256xf32, #tpu.memory_space<vmem>>, vector<8x256xf32>
    tpu.vector_store %arg4[%c0_3, %c0_4], %8 {strides = array<i32>} : memref<8x256xf32, #tpu.memory_space<vmem>>, vector<8x256xf32>,
    return
  }
  func.func @transform_0(%arg0: i32, %arg1: i32) -> (i32, i32) {
    %c0_i32 = arith.constant 0 : i32
    return %arg0, %arg1 : i32, i32
  }
  func.func @transform_1(%arg0: i32, %arg1: i32) -> (i32, i32) {
    %c0_i32 = arith.constant 0 : i32
    %c0_i32_0 = arith.constant 0 : i32
    return %arg0, %c0_i32 : i32, i32
  }
  func.func @transform_2(%arg0: i32, %arg1: i32) -> (i32, i32) {
    %c0_i32 = arith.constant 0 : i32
    return %arg0, %arg1 : i32, i32
  }
}

</mosaic_0001>

<llo_original>
// kernel: squeeze.1
$region0: #{squeeze.1}
  %s0 = inlined_call_operand.vmem [shape: f32[8], index: 0, kind: input, shape index: {}]
  %s1 = inlined_call_operand.vmem [shape: f32[2,4], index: 1, kind: output, shape index: {}]
  $region1: #{squeeze.1} parent=0
    #allocation0 [shape = 'u8[4096]{0}', space=vmem, size = 0x1000, scoped, tag = 'scoped mem for output reshape']
    #allocation1 [shape = 'u8[4096]{0}', space=vmem, size = 0x1000, scoped, tag = 'scoped mem for input reshape']
    %s3 = sshllo.u32 0, 1
    %v4 = vld [vmem:[%s0] sm:%s3]
    %5 = vst [vmem:[#allocation1] sm:%s3] %v4
    %v6 = vld [vmem:[#allocation1] sm:$0x1]
    %vm7 = vcmask 31744
    %8 = vst.msk [vmem:[#allocation0] sm:$0x1] %vm7, %v6
    %v9 = vld [vmem:[#allocation1] sm:$0x1]
    %10 = vrot.lane.b32.xlu0 %v9, 124
    %v11 = vpop.permute.xlu0 %10
    %vm12 = vcmask 31744
    %s13 = scalar_lea.vmem [#allocation0], 1
    %14 = vst.msk [vmem:[%s13] sm:$0x1] %vm12, %v11
    %s16 = sshllo.u32 0, 2
    %v18 = vld [vmem:[#allocation0] sm:%s16]
    %s19 = sshllo.u32 0, 2
    %20 = vst [vmem:[%s1] sm:%s19] %v18

// kernel: channel_threshold_forward.2
$region0: #{channel_threshold_forward.2}
  #allocation0 [shape = 'u32[]', space=smem, size = 0x4, offset = 0x4, fixed_abs, tag = 'smem constant byte address 0x4 - core index']
  #allocation1 [shape = 'u32[144,128]{1,0:T(1,128)}', space=vmem, size = 0x12000, scoped, tag = 'internal scratch']
  %s0 = inlined_call_operand.vmem [shape: f32[8,256], index: 0, kind: input, shape index: {}]
  %s1 = inlined_call_operand.vmem [shape: f32[8,1], index: 1, kind: output, shape index: {}]
  %s2 = sld [smem:[#allocation0]]
  $region22: #{channel_threshold_forward.2} parent=0
    _
  %s4 = ssub.s32 1, %s2
  %s5 = scalar_select 0, %s4, %s2
  // Predicated region
  $region2: #{channel_threshold_forward.2} parent=0 // pred_check
    _
  $region3: #{channel_threshold_forward.2} parent=0 // pred_check_branch
    %7 = sbr.rel (0) target = $region5
  $region4: #{channel_threshold_forward.2} parent=0 // pred_region
    _
  $region5: #{channel_threshold_forward.2} parent=0 // pred_fallthru
    _
  %p8 = scmp.eq.s32.totalorder 0, 0
  // Predicated region
  $region6: #{channel_threshold_forward.2} parent=0 // pred_check
    %p9 = pneg %p8
  $region7: #{channel_threshold_forward.2} parent=0 // pred_check_branch
    %11 = sbr.rel (%p9) target = $region9
  $region8: #{channel_threshold_forward.2} parent=0 // pred_region
    %vm12 = vcmask 7168
    %13 = vst.msk [vmem:[%s1] sm:$0xff] %vm12, 0.0
  $region9: #{channel_threshold_forward.2} parent=0 // pred_fallthru
    _
  %v14 = vld [vmem:[%s1] sm:$0xff]
  %v15 = vld [vmem:[%s0] sm:$0xff]
  %v16 = vld [vmem:[%s0 + $0x8] sm:$0xff]
  %v17 = vand.u32 2147483647, %v15
  %v18 = vand.u32 2147483647, %v16
  %v19 = vadd.f32 %v17, %v18
  %20 = vadd.xlane.f32.xlu0 %v19
  %v21 = vpop.xlane.xlu0 %20
  %v22 = vadd.f32 %v14, %v21
  %vm23 = vcmask 7168
  %24 = vst.msk [vmem:[%s1] sm:$0xff] %vm23, %v22
  // Predicated region
  $region10: #{channel_threshold_forward.2} parent=0 // pred_check
    %p25 = pneg %p8
  $region11: #{channel_threshold_forward.2} parent=0 // pred_check_branch
    %27 = sbr.rel (%p25) target = $region13
  $region12: #{channel_threshold_forward.2} parent=0 // pred_region
    %v28 = vld [vmem:[%s1] sm:$0xff]
    %v29 = vmul.f32 %v28, 0.00390625
    %30 = vst.msk [vmem:[%s1] sm:$0xff] %vm23, %v29
  $region13: #{channel_threshold_forward.2} parent=0 // pred_fallthru
    _
  // Predicated region
  $region14: #{channel_threshold_forward.2} parent=0 // pred_check
    _
  $region15: #{channel_threshold_forward.2} parent=0 // pred_check_branch
    %32 = sbr.rel (0) target = $region17
  $region16: #{channel_threshold_forward.2} parent=0 // pred_region
    _
  $region17: #{channel_threshold_forward.2} parent=0 // pred_fallthru
    _
  // Predicated region
  $region18: #{channel_threshold_forward.2} parent=0 // pred_check
    _
  $region19: #{channel_threshold_forward.2} parent=0 // pred_check_branch
    %34 = sbr.rel (0) target = $region21
  $region20: #{channel_threshold_forward.2} parent=0 // pred_region
    _
  $region21: #{channel_threshold_forward.2} parent=0 // pred_fallthru
    _

// kernel: channel_threshold_forward.3
$region0: #{channel_threshold_forward.3}
  #allocation0 [shape = 'u32[]', space=smem, size = 0x4, offset = 0x4, fixed_abs, tag = 'smem constant byte address 0x4 - core index']
  #allocation1 [shape = 'u32[144,128]{1,0:T(1,128)}', space=vmem, size = 0x12000, scoped, tag = 'internal scratch']
  %s0 = inlined_call_operand.vmem [shape: f32[8,256], index: 0, kind: input, shape index: {}]
  %s1 = inlined_call_operand.vmem [shape: f32[8,1], index: 1, kind: input, shape index: {}]
  %s2 = inlined_call_operand.vmem [shape: f32[8,256], index: 2, kind: output, shape index: {}]
  %s3 = sld [smem:[#allocation0]]
  $region18: #{channel_threshold_forward.3} parent=0
    _
  %s5 = ssub.s32 1, %s3
  %s6 = scalar_select 0, %s5, %s3
  // Predicated region
  $region2: #{channel_threshold_forward.3} parent=0 // pred_check
    _
  $region3: #{channel_threshold_forward.3} parent=0 // pred_check_branch
    %8 = sbr.rel (0) target = $region5
  $region4: #{channel_threshold_forward.3} parent=0 // pred_region
    _
  $region5: #{channel_threshold_forward.3} parent=0 // pred_fallthru
    _
  // Predicated region
  $region6: #{channel_threshold_forward.3} parent=0 // pred_check
    _
  $region7: #{channel_threshold_forward.3} parent=0 // pred_check_branch
    %10 = sbr.rel (0) target = $region9
  $region8: #{channel_threshold_forward.3} parent=0 // pred_region
    _
  $region9: #{channel_threshold_forward.3} parent=0 // pred_fallthru
    _
  %v11 = vld [vmem:[%s0] sm:$0xff]
  %v12 = vld [vmem:[%s0 + $0x8] sm:$0xff]
  %v13 = vld [vmem:[%s1] sm:$0xff]
  %v14 = vsub.f32 0.0, %v13
  %16 = vset.pattern.permute.xlu0 0
  %17 = vperm.xlu0 %16, %v14
  %v18 = vpop.permute.xlu0 %17
  %v20 = vmax.f32 %v18, %v11
  %v21 = vmax.f32 %v18, %v12
  %23 = vset.pattern.permute.xlu0 0
  %24 = vperm.xlu0 %23, %v13
  %v25 = vpop.permute.xlu0 %24
  %v27 = vmin.f32 %v25, %v20
  %v28 = vmin.f32 %v25, %v21
  %v29 = vsub.f32 %v11, %v27
  %v30 = vsub.f32 %v12, %v28
  %31 = vst [vmem:[%s2] sm:$0xff] %v29
  %32 = vst [vmem:[%s2 + $0x8] sm:$0xff] %v30
  // Predicated region
  $region10: #{channel_threshold_forward.3} parent=0 // pred_check
    _
  $region11: #{channel_threshold_forward.3} parent=0 // pred_check_branch
    %34 = sbr.rel (0) target = $region13
  $region12: #{channel_threshold_forward.3} parent=0 // pred_region
    _
  $region13: #{channel_threshold_forward.3} parent=0 // pred_fallthru
    _
  // Predicated region
  $region14: #{channel_threshold_forward.3} parent=0 // pred_check
    _
  $region15: #{channel_threshold_forward.3} parent=0 // pred_check_branch
    %36 = sbr.rel (0) target = $region17
  $region16: #{channel_threshold_forward.3} parent=0 // pred_region
    _
  $region17: #{channel_threshold_forward.3} parent=0 // pred_fallthru
    _

</llo_original>
